<compile_context>
chip_gen: v6e
topology: v6e:2x2x1
jax: 0.10.0
libtpu: 0.0.40
codegen_flags: <defaults>
</compile_context>

<pallas_src>
import functools

import jax
import jax.numpy as jnp
from jax.experimental import pallas as pl
from jax.experimental.pallas import tpu as pltpu


def _rmsnorm_kernel(x_ref, scale_ref, o_ref, *, eps, inv_hidden):
    # x_ref: (block_rows, hidden); scale_ref: (1, hidden), already f32.
    x = x_ref[...].astype(jnp.float32)
    # sum + folded 1/hidden keeps the per-row divide off the VPU path; rsqrt
    # goes to the EUP slot which is free in this mem-bound kernel.
    ssq = jnp.sum(x * x, axis=-1, keepdims=True)
    inv = jax.lax.rsqrt(ssq * inv_hidden + eps)
    # Single fused expression: no extra materialized x_normed tile.
    o_ref[...] = (x * inv * scale_ref[...]).astype(o_ref.dtype)


def _round_up(n, m):
    return -(-n // m) * m


def _vmem_capacity_bytes():
    try:
        return int(pltpu.get_tpu_info().vmem_capacity_bytes)
    except Exception:
        # Conservative fallback: v7x has only 64 MiB per TensorCore. Assuming
        # 128 MiB here on a v7x host would risk a compile-time VMEM OOM.
        return 64 * 1024 * 1024


def _sublane(dtype):
    # f32 -> 8, bf16 -> 16, int8/fp8 -> 32 (sub-32-bit dtypes pack sublanes).
    itemsize = jnp.dtype(dtype).itemsize
    return max(8, 32 // max(itemsize, 1))


def _pick_block_rows(rows, hidden, dtype, vmem_budget_bytes, target_tile_bytes):
    """Row-tile size: hit ~target_tile_bytes of raw input per step while the
    full per-step footprint (double-buffered in+out + f32 working set) fits
    in the VMEM budget."""
    itemsize = jnp.dtype(dtype).itemsize
    sub = _sublane(dtype)
    # Per-row VMEM footprint per grid step:
    #   2x double-buffered input + 2x double-buffered output (in x.dtype)
    #   + ~4 f32-wide temporaries (upcast x, x*x, broadcast inv, product).
    bytes_per_row = 4 * hidden * itemsize + 4 * hidden * 4
    br_budget = max(vmem_budget_bytes // bytes_per_row, 1)
    br_target = max(target_tile_bytes // max(hidden * itemsize, 1), 1)
    br = min(br_budget, br_target, 16384)   # no tiny hard cap; budget-driven
    br = (br // sub) * sub                  # dtype-aware sublane alignment
    br = max(br, sub)
    br = min(br, _round_up(rows, sub))      # never larger than padded rows
    return max(br, sub)


def rmsnorm(x, scale, eps=1e-5, block_rows=None):
    """x: (..., hidden); scale: (hidden,). Returns same shape/dtype as x."""
    orig_shape = x.shape
    hidden = orig_shape[-1]
    x2d = x.reshape(-1, hidden)
    rows = x2d.shape[0]

    vmem_bytes = _vmem_capacity_bytes()
    if vmem_bytes <= 96 * 1024 * 1024:
        # v7x-class part (64 MiB/TC): ~52 MiB scoped limit, ~12 MiB headroom.
        vmem_limit = 52 * 1024 * 1024
    else:
        # v5e/v6e-class part (128 MiB): plenty of room for big tiles.
        vmem_limit = 96 * 1024 * 1024
    vmem_limit = min(vmem_limit, vmem_bytes - 8 * 1024 * 1024)
    # Never regress below 32 MiB (v5e's scoped default is only 16 MiB).
    vmem_limit = max(int(vmem_limit), 32 * 1024 * 1024)

    # ~8 MiB of raw input per step keeps per-step overhead <2% even at
    # v7x's 3.2 TB/s HBM; the VMEM budget above is what actually bounds it.
    target_tile_bytes = 8 * 1024 * 1024

    if block_rows is None:
        block_rows = _pick_block_rows(
            rows, hidden, x.dtype,
            vmem_budget_bytes=vmem_limit - 4 * 1024 * 1024,
            target_tile_bytes=target_tile_bytes)

    # Keep scale as (1, hidden) f32 so the kernel never re-casts it per step.
    scale2d = scale.reshape(1, hidden).astype(jnp.float32)

    # Ragged tail handled by Pallas padding; RMSNorm is per-row, so padded
    # rows compute garbage that is never written back -- harmless.
    grid = (pl.cdiv(rows, block_rows),)

    # NOTE: best performance needs hidden % 128 == 0 (lane-dense stores);
    # other hidden sizes are still correct, just use masked partial stores.
    kernel = functools.partial(_rmsnorm_kernel, eps=eps, inv_hidden=1.0 / hidden)

    out = pl.pallas_call(
        kernel,
        out_shape=jax.ShapeDtypeStruct((rows, hidden), x.dtype),
        grid_spec=pltpu.PrefetchScalarGridSpec(
            num_scalar_prefetch=0,
            grid=grid,
            in_specs=[
                pl.BlockSpec((block_rows, hidden), lambda i: (i, 0)),
                pl.BlockSpec((1, hidden), lambda i: (0, 0)),
            ],
            out_specs=pl.BlockSpec((block_rows, hidden), lambda i: (i, 0)),
        ),
        compiler_params=pltpu.CompilerParams(
            dimension_semantics=("parallel",),
            vmem_limit_bytes=vmem_limit,
        ),
    )(x2d, scale2d)

    return out.reshape(orig_shape)


def _reference(x, scale, eps):
    norm_x = jnp.mean(x * x, axis=-1, keepdims=True)
    return scale * (x * jax.lax.rsqrt(norm_x + eps))


if __name__ == "__main__":
    key = jax.random.PRNGKey(0)
    eps = 1e-5  # matches the module default (eps: float = 1e-05)

    kx, ks, kx2 = jax.random.split(key, 3)

    # 1) f32, small lane-dense shape (hidden multiple of 128).
    batch, seq, hidden = 2, 8, 128
    x = jax.random.normal(kx, (batch, seq, hidden), dtype=jnp.float32)
    # Module init is ones; use a non-trivial scale to exercise the multiply.
    scale = 1.0 + 0.1 * jax.random.normal(ks, (hidden,), dtype=jnp.float32)

    out = jax.block_until_ready(rmsnorm(x, scale, eps=eps))
    ref = _reference(x, scale, eps)
    assert out.shape == x.shape and out.dtype == x.dtype
    assert jnp.allclose(out, ref, atol=1e-5, rtol=1e-5)

    # 2) Ragged rows: rows=15 with block_rows=8 exercises the cdiv tail path.
    x2 = jax.random.normal(kx2, (3, 5, hidden), dtype=jnp.float32)
    out2 = jax.block_until_ready(rmsnorm(x2, scale, eps=eps, block_rows=8))
    ref2 = _reference(x2, scale, eps)
    assert jnp.allclose(out2, ref2, atol=1e-5, rtol=1e-5)

    # 3) bf16 production path: exercises the f32 upcast, 16-sublane packing,
    #    auto tile sizing and a ragged, non-multiple-of-16 row count.
    hid3 = 256
    kb1, kb2 = jax.random.split(kx2)
    xb = jax.random.normal(kb1, (2, 13, hid3), dtype=jnp.float32).astype(jnp.bfloat16)
    sb = (1.0 + 0.1 * jax.random.normal(kb2, (hid3,), dtype=jnp.float32)).astype(jnp.bfloat16)
    outb = jax.block_until_ready(rmsnorm(xb, sb, eps=eps))
    refb = _reference(xb.astype(jnp.float32), sb.astype(jnp.float32), eps)
    assert outb.shape == xb.shape and outb.dtype == jnp.bfloat16
    assert jnp.allclose(outb.astype(jnp.float32), refb, atol=3e-2, rtol=3e-2)

    print("KERNEL_OK")
</pallas_src>

<mosaic_0001>
module attributes {stable_mosaic.version = 11 : i64} {
  func.func @_rmsnorm_kernel(%arg0: i32, %arg1: memref<16x128xf32, #tpu.memory_space<vmem>>, %arg2: memref<1x128xf32, #tpu.memory_space<vmem>>, %arg3: memref<16x128xf32, #tpu.memory_space<vmem>>) attributes {dimension_semantics = [#tpu.dimension_semantics<parallel>], iteration_bounds = array<i64: 1>, scalar_prefetch = 0 : i64, scratch_operands = 0 : i64, tpu.core_type = #tpu.core_type<tc>, window_params = [{transform_indices = @transform_0, window_bounds = array<i64: 16, 128>}, {pipeline_mode = #tpu.pipeline_mode<synchronous>, transform_indices = @transform_1, window_bounds = array<i64: 1, 128>}, {transform_indices = @transform_2, window_bounds = array<i64: 16, 128>}]} {
    %c0 = arith.constant 0 : index
    %c0_0 = arith.constant 0 : index
    %0 = vector.load %arg1[%c0, %c0_0] : memref<16x128xf32, #tpu.memory_space<vmem>>, vector<16x128xf32>
    %1 = arith.mulf %0, %0 : vector<16x128xf32>
    %cst = arith.constant dense<0.000000e+00> : vector<16xf32>
    %2 = vector.multi_reduction <add>, %1, %cst [1] : vector<16x128xf32> to vector<16xf32>
    %3 = vector.shape_cast %2 : vector<16xf32> to vector<16x1xf32>
    %cst_1 = arith.constant 7.812500e-03 : f32
    %4 = vector.broadcast %cst_1 : f32 to vector<16x1xf32>
    %5 = arith.mulf %3, %4 : vector<16x1xf32>
    %cst_2 = arith.constant 9.99999974E-6 : f32
    %6 = vector.broadcast %cst_2 : f32 to vector<16x1xf32>
    %7 = arith.addf %5, %6 : vector<16x1xf32>
    %8 = math.rsqrt %7 : vector<16x1xf32>
    %9 = vector.broadcast %8 : vector<16x1xf32> to vector<16x128xf32>
    %10 = arith.mulf %0, %9 : vector<16x128xf32>
    %c0_3 = arith.constant 0 : index
    %c0_4 = arith.constant 0 : index
    %11 = vector.load %arg2[%c0_3, %c0_4] : memref<1x128xf32, #tpu.memory_space<vmem>>, vector<1x128xf32>
    %12 = vector.broadcast %11 : vector<1x128xf32> to vector<16x128xf32>
    %13 = arith.mulf %10, %12 : vector<16x128xf32>
    %c0_5 = arith.constant 0 : index
    %c0_6 = arith.constant 0 : index
    %14 = vector.load %arg3[%c0_5, %c0_6] : memref<16x128xf32, #tpu.memory_space<vmem>>, vector<16x128xf32>
    tpu.vector_store %arg3[%c0_5, %c0_6], %13 {strides = array<i32>} : memref<16x128xf32, #tpu.memory_space<vmem>>, vector<16x128xf32>,
    return
  }
  func.func @transform_0(%arg0: i32) -> (i32, i32) {
    %c0_i32 = arith.constant 0 : i32
    %c0_i32_0 = arith.constant 0 : i32
    return %arg0, %c0_i32 : i32, i32
  }
  func.func @transform_1(%arg0: i32) -> (i32, i32) {
    %c0_i32 = arith.constant 0 : i32
    %c0_i32_0 = arith.constant 0 : i32
    %c0_i32_1 = arith.constant 0 : i32
    return %c0_i32, %c0_i32_0 : i32, i32
  }
  func.func @transform_2(%arg0: i32) -> (i32, i32) {
    %c0_i32 = arith.constant 0 : i32
    %c0_i32_0 = arith.constant 0 : i32
    return %arg0, %c0_i32 : i32, i32
  }
}

</mosaic_0001>

<llo_original>
// kernel: tpu_custom_call.1
$region0: #{tpu_custom_call.1}
  #allocation0 [shape = 'u32[]', space=smem, size = 0x4, offset = 0x4, fixed_abs, tag = 'smem constant byte address 0x4 - core index']
  #allocation1 [shape = 'u32[144,128]{1,0:T(1,128)}', space=vmem, size = 0x12000, scoped, tag = 'internal scratch']
  %s0 = inlined_call_operand.hbm [shape: f32[16,128], index: 0, kind: input, shape index: {}]
  %s1 = inlined_call_operand.vmem [shape: f32[1,128], index: 1, kind: input, shape index: {}]
  %s2 = inlined_call_operand.hbm [shape: f32[16,128], index: 2, kind: output, shape index: {}]
  %s3 = sld [smem:[#allocation0]]
  $region22: #{tpu_custom_call.1} parent=0
    _
  %s5 = ssub.s32 1, %s3
  %s6 = scalar_select 0, %s5, %s3
  $region1: #{tpu_custom_call.1} parent=0
    #allocation2 [shape = 'u8[8192]{0}', space=vmem, size = 0x2000, scoped, tag = 'input window, operand 0, single buffered']
    #allocation3 [shape = 's32[1]{0}', space=sflag, size = 0x4, scoped, tag = 'scoped memory for tpu_custom_call.1']
    #allocation4 [shape = 's32[1]{0}', space=sflag, size = 0x4, scoped, tag = 'scoped memory for tpu_custom_call.1']
    #allocation5 [shape = 'u8[8192]{0}', space=vmem, size = 0x2000, scoped, tag = 'output window, operand 0, single buffered']
    %7 = vsyncpa [#allocation3], 0
    %8 = vsyncpa [#allocation4], 0
    // Predicated region
    $region2: #{tpu_custom_call.1} parent=1 // pred_check
      _
    $region3: #{tpu_custom_call.1} parent=1 // pred_check_branch
      %10 = sbr.rel (0) target = $region5
    $region4: #{tpu_custom_call.1} parent=1 // pred_region
      %s12 = ssub.s32 256, 256
      %13 = vsyncadd [#allocation3], %s12
      %s14 = sshll.u32 [#allocation2], 4
      %s15 = int_to_ptr.vmem [resolvable:$true] %s14
      %20 = dma.hbm_to_vmem [thread:$0]  %s0, 256, %s15, [#allocation3], 128, 128, 8
    $region5: #{tpu_custom_call.1} parent=1 // pred_fallthru
      _
    // Predicated region
    $region6: #{tpu_custom_call.1} parent=1 // pred_check
      _
    $region7: #{tpu_custom_call.1} parent=1 // pred_check_branch
      %22 = sbr.rel (0) target = $region9
    $region8: #{tpu_custom_call.1} parent=1 // pred_region
      _
    $region9: #{tpu_custom_call.1} parent=1 // pred_fallthru
      _
    // Predicated region
    $region10: #{tpu_custom_call.1} parent=1 // pred_check
      _
    $region11: #{tpu_custom_call.1} parent=1 // pred_check_branch
      %24 = sbr.rel (0) target = $region13
    $region12: #{tpu_custom_call.1} parent=1 // pred_region
      %25 = dma.done [#allocation3], 256
    $region13: #{tpu_custom_call.1} parent=1 // pred_fallthru
      _
    %v26 = vld [vmem:[#allocation2] sm:$0xff]
    %v27 = vld [vmem:[#allocation2 + $0x8] sm:$0xff]
    %v28 = vmul.f32 %v26, %v26
    %v29 = vmul.f32 %v27, %v27
    %30 = vadd.xlane.f32.xlu0 %v28
    %v31 = vpop.xlane.xlu0 %30
    %32 = vadd.xlane.f32.xlu0 %v29
    %v33 = vpop.xlane.xlu0 %32
    %v34 = vmul.f32 %v31, 0.0078125
    %v35 = vmul.f32 %v33, 0.0078125
    %v36 = vadd.f32 %v34, 1e-05
    %v37 = vadd.f32 %v35, 1e-05
    %v38 = vrsqrt.pop %v36
    %v39 = vrsqrt.pop %v37
    %v40 = vmul.f32 %v26, %v38
    %v41 = vmul.f32 %v27, %v39
    %v42 = vld [vmem:[%s1] sm:$0x1]
    %v44 = vlaneseq
    %v45 = vshrl.u32 %v44, 7
    %v46 = vsub.s32 0, %v45
    %v47 = vrot.slane %v42, %v46
    %v49 = vmul.f32 %v40, %v47
    %v50 = vmul.f32 %v41, %v47
    %51 = vst [vmem:[#allocation5] sm:$0xff] %v49
    %52 = vst [vmem:[#allocation5 + $0x8] sm:$0xff] %v50
    // Predicated region
    $region14: #{tpu_custom_call.1} parent=1 // pred_check
      _
    $region15: #{tpu_custom_call.1} parent=1 // pred_check_branch
      %54 = sbr.rel (0) target = $region17
    $region16: #{tpu_custom_call.1} parent=1 // pred_region
      %s56 = ssub.s32 256, 256
      %57 = vsyncadd [#allocation4], %s56
      %s58 = sshll.u32 [#allocation5], 4
      %s59 = int_to_ptr.vmem [resolvable:$true] %s58
      %64 = dma.vmem_to_hbm [thread:$0]  %s59, 256, %s2, [#allocation4], 128, 128, 8
    $region17: #{tpu_custom_call.1} parent=1 // pred_fallthru
      _
    // Predicated region
    $region18: #{tpu_custom_call.1} parent=1 // pred_check
      _
    $region19: #{tpu_custom_call.1} parent=1 // pred_check_branch
      %66 = sbr.rel (0) target = $region21
    $region20: #{tpu_custom_call.1} parent=1 // pred_region
      %67 = dma.done [#allocation4], 256
    $region21: #{tpu_custom_call.1} parent=1 // pred_fallthru
      _
    %68 = vsyncpa [#allocation3], 1
    %69 = vsyncpa [#allocation4], 1

</llo_original>
